<compile_context>
chip_gen: v6e
topology: v6e:2x2x1
jax: 0.10.0
libtpu: 0.0.40
codegen_flags: <defaults>
</compile_context>

<pallas_src>
import jax
import jax.numpy as jnp
from jax.experimental import pallas as pl
from jax.experimental.pallas import tpu as pltpu


# ----------------------------------------------------------------------------
# host-side weight preprocessing (runs once per call, plain XLA)
# ----------------------------------------------------------------------------
def _banded_conv_weight(w_hwio, wc, pad, part_channels):
    """Embed a KxK 'same' conv as a single (K*Wp*Cin, Wc*Cout) matmul weight.

    Row index = dy*Wp*Cin_total + (part row offset) + w_in*Cp + ci
    Col index = x*Cout + co
    Value     = w[dy, w_in - x, ci_global, co] if 0 <= w_in - x < K else 0.
    """
    k = int(w_hwio.shape[0])
    cout = int(w_hwio.shape[3])
    wp = wc + 2 * pad
    w_in = jnp.arange(wp)[:, None]
    xs = jnp.arange(wc)[None, :]
    dx = w_in - xs
    valid = (dx >= 0) & (dx < k)
    dxc = jnp.clip(dx, 0, k - 1)
    bands = []
    for dy in range(k):
        rows = []
        c0 = 0
        for cp in part_channels:
            ws = w_hwio[dy, :, c0:c0 + cp, :]                    # (K, cp, Cout)
            g = ws[dxc]                                          # (Wp, Wc, cp, Cout)
            g = jnp.where(valid[:, :, None, None], g, 0.0)
            g = jnp.transpose(g, (0, 2, 1, 3)).reshape(wp * cp, wc * cout)
            rows.append(g)
            c0 += cp
        bands.append(jnp.concatenate(rows, axis=0))
    return jnp.concatenate(bands, axis=0).astype(jnp.float32)


# ----------------------------------------------------------------------------
# fused kernel factory (static config baked in at trace time)
# ----------------------------------------------------------------------------
def _make_fused_kernel(*, pre_pool, post_pool, wmode, has_w, c_x, c_w,
                       hc, wc, k, pad):
    parts_c = [c_x] + ([c_w] if (has_w and wmode in (2, 3)) else [])
    ct = sum(parts_c)
    wp = wc + 2 * pad

    def _pool2x2_flat(v, cp):
        # 2x2 max pool of a (rows, cols*cp) lane-flattened slab.
        # Only used for pool_mode == 1 (not the demo path).
        rows, cols_cp = v.shape
        cols = cols_cp // cp
        t = v.reshape(rows // 2, 2, cols // 2, 2 * cp)
        t = jnp.max(t, axis=1)
        t = jnp.maximum(t[:, :, :cp], t[:, :, cp:])
        return t.reshape(rows // 2, (cols // 2) * cp)

    def kernel(*refs):
        idx = 0
        x_ref = refs[idx]; idx += 1
        w_ref = bd_ref = bwb_ref = None
        if has_w:
            w_ref = refs[idx]; idx += 1
            if wmode == 3:
                bd_ref = refs[idx]
                bwb_ref = refs[idx + 1]
                idx += 2
        wm_ref = refs[idx]
        bt_ref = refs[idx + 1]
        o_ref = refs[idx + 2]
        patch_ref = refs[idx + 3]

        # -------- stage 1: (optional) 2x2 max pool of x ----------------------
        if pre_pool:
            # the 4 window positions live on a leading axis -> pure VPU max
            act = jnp.maximum(jnp.maximum(x_ref[0, 0], x_ref[0, 1]),
                              jnp.maximum(x_ref[0, 2], x_ref[0, 3]))
        else:
            act = x_ref[0]                              # (rows, cols*c_x)

        # -------- stage 2: wavelet merge -------------------------------------
        parts = [(act, c_x)]
        if has_w:
            wv = w_ref[0]
            if wmode == 1:
                parts = [(act + wv, c_x)]
            elif wmode == 2:
                parts = [(act, c_x), (wv, c_w)]
            elif wmode == 3:
                # 1x1 conv + ReLU as one block-diagonal matmul (host-built)
                wv = jnp.dot(wv, bd_ref[...],
                             preferred_element_type=jnp.float32)
                wv = jnp.maximum(wv + bwb_ref[...], 0.0)
                parts = [(act, c_x), (wv, c_w)]

        # -------- stage 3: (optional) pool after wavelet merge ---------------
        if post_pool:
            parts = [(_pool2x2_flat(v, cp), cp) for v, cp in parts]

        # -------- stage 4: KxK conv + bias + ReLU as ONE banded matmul -------
        # Zero-fill realises the conv zero padding directly in VMEM.
        patch_ref[...] = jnp.zeros_like(patch_ref)
        for dy in range(k):
            y_lo = max(0, pad - dy)
            y_hi = min(hc, hc + pad - dy)
            if y_hi <= y_lo:
                continue
            s_lo = y_lo + dy - pad
            s_hi = y_hi + dy - pad
            base = dy * wp * ct
            coff = 0
            for v, cp in parts:
                col = base + coff * wp + pad * cp
                patch_ref[y_lo:y_hi, col:col + wc * cp] = v[s_lo:s_hi, :]
                coff += cp
        acc = jnp.dot(patch_ref[...], wm_ref[...],
                      preferred_element_type=jnp.float32)
        acc = acc + bt_ref[...]          # bias added once (hoisted out of any loop)
        o_ref[0] = jnp.maximum(acc, 0.0).astype(o_ref.dtype)

    return kernel


# ----------------------------------------------------------------------------
# BaseEncoderBlock.forward  (public wrapper: PyTorch-style NCHW in/out)
# ----------------------------------------------------------------------------
def base_encoder_block_forward(x_nchw, w_nchw=None, *, params,
                               wavelets_mode=0, pool_mode=0, pool_block=True):
    wmode = int(wavelets_mode)
    b, c, h, w = x_nchw.shape
    pre_pool = bool(pool_block) and pool_mode == 0
    post_pool = bool(pool_block) and pool_mode == 1
    has_w = (w_nchw is not None) and wmode in (1, 2, 3)

    # ---- present x to the kernel (single boundary transpose, lane-flattened)
    if pre_pool:
        h1, w1 = h // 2, w // 2                      # VALID-pool crop for odd dims
        xc = x_nchw[:, :, :2 * h1, :2 * w1]
        xk = (xc.reshape(b, c, h1, 2, w1, 2)
                .transpose(0, 3, 5, 2, 4, 1)         # (B, p, q, H1, W1, C)
                .reshape(b, 4, h1, w1 * c))
        x_spec = pl.BlockSpec((1, 4, h1, w1 * c), lambda i: (i, 0, 0, 0))
    else:
        h1, w1 = h, w
        if post_pool:
            h1, w1 = 2 * (h // 2), 2 * (w // 2)
        xk = (x_nchw[:, :, :h1, :w1]
              .transpose(0, 2, 3, 1).reshape(b, h1, w1 * c))
        x_spec = pl.BlockSpec((1, h1, w1 * c), lambda i: (i, 0, 0))

    in_arrays = [xk]
    in_specs = [x_spec]

    # ---- wavelet input -------------------------------------------------------
    c_w = 0
    if has_w:
        bw_, cw_, hw_, ww_ = w_nchw.shape
        if post_pool:
            hw_, ww_ = 2 * (hw_ // 2), 2 * (ww_ // 2)
        wk = (w_nchw[:, :, :hw_, :ww_]
              .transpose(0, 2, 3, 1).reshape(bw_, hw_, ww_ * cw_))
        in_arrays.append(wk)
        in_specs.append(pl.BlockSpec((1, hw_, ww_ * cw_), lambda i: (i, 0, 0)))
        c_w = cw_
        if wmode == 3:
            wbw = params["wblock_w"][0, 0].astype(jnp.float32)   # (Cw, Cw_out)
            c_w = int(wbw.shape[1])
            bd = jnp.kron(jnp.eye(ww_, dtype=jnp.float32), wbw)  # block-diag 1x1 conv
            bwb = jnp.tile(params["wblock_b"].astype(jnp.float32), ww_)[None, :]
            in_arrays += [bd, bwb]
            in_specs += [pl.BlockSpec(bd.shape, lambda i: (0, 0)),
                         pl.BlockSpec(bwb.shape, lambda i: (0, 0))]

    # ---- conv geometry + banded weight ---------------------------------------
    hc, wc = (h1 // 2, w1 // 2) if post_pool else (h1, w1)
    k = int(params["block_w"].shape[0])
    cout = int(params["block_w"].shape[3])
    pad = (k - 1) // 2                                  # 'same' conv (k=3 -> pad=1)
    part_channels = [c] + ([c_w] if (has_w and wmode in (2, 3)) else [])
    ct = sum(part_channels)
    wp = wc + 2 * pad
    wm = _banded_conv_weight(params["block_w"].astype(jnp.float32),
                             wc, pad, part_channels)    # (K*Wp*Ct, Wc*Cout)
    bt = jnp.tile(params["block_b"].astype(jnp.float32), wc)[None, :]
    in_arrays += [wm, bt]
    in_specs += [pl.BlockSpec(wm.shape, lambda i: (0, 0)),
                 pl.BlockSpec(bt.shape, lambda i: (0, 0))]

    kernel = _make_fused_kernel(pre_pool=pre_pool, post_pool=post_pool,
                                wmode=wmode, has_w=has_w, c_x=c, c_w=c_w,
                                hc=hc, wc=wc, k=k, pad=pad)

    out = pl.pallas_call(
        kernel,
        out_shape=jax.ShapeDtypeStruct((b, hc, wc * cout), jnp.float32),
        grid=(b,),
        in_specs=in_specs,
        out_specs=pl.BlockSpec((1, hc, wc * cout), lambda i: (i, 0, 0)),
        scratch_shapes=[pltpu.VMEM((hc, k * wp * ct), jnp.float32)],
        compiler_params=pltpu.CompilerParams(
            dimension_semantics=("parallel",)),   # shards batch across TCs on v7x
    )(*in_arrays)

    # lane-dense kernel output (B, Hc, Wc*Cout) -> PyTorch NCHW
    return out.reshape(b, hc, wc, cout).transpose(0, 3, 1, 2)


# ----------------------------------------------------------------------------
# Pure-JAX reference for verification
# ----------------------------------------------------------------------------
def ref_forward(x_nchw, w_nchw, params, wavelets_mode, pool_mode, pool_block):
    wmode = int(wavelets_mode)
    x = jnp.transpose(x_nchw, (0, 2, 3, 1))
    wv = None if w_nchw is None else jnp.transpose(w_nchw, (0, 2, 3, 1))

    def pool(z):
        return jax.lax.reduce_window(z, -jnp.inf, jax.lax.max,
                                     (1, 2, 2, 1), (1, 2, 2, 1), "VALID")

    def conv_relu(z, wt, bs, pad):
        y = jax.lax.conv_general_dilated(
            z, wt, (1, 1), [(pad, pad), (pad, pad)],
            dimension_numbers=("NHWC", "HWIO", "NHWC"))
        return jnp.maximum(y + bs, 0.0)

    if pool_block and pool_mode == 0:
        x = pool(x)
    if wv is not None:
        if wmode == 1:
            x = x + wv
        if wmode == 2:
            x = jnp.concatenate([x, wv], axis=-1)
        if wmode == 3:
            wv = conv_relu(wv, params["wblock_w"], params["wblock_b"], 0)
            x = jnp.concatenate([x, wv], axis=-1)
    if pool_block and pool_mode == 1:
        x = pool(x)
    x = conv_relu(x, params["block_w"], params["block_b"], 1)
    return jnp.transpose(x, (0, 3, 1, 2))


# ----------------------------------------------------------------------------
if __name__ == "__main__":
    B, C, H, W = 2, 4, 16, 16
    Cout = 8
    wavelets_mode, pool_mode, pool_block = 1, 0, True

    key = jax.random.PRNGKey(0)
    kx, kw, k1, k2, k3, k4 = jax.random.split(key, 6)

    x = jax.random.normal(kx, (B, C, H, W), jnp.float32)          # NCHW input
    # wavelet input matches x after 2x2 pooling (pool_mode=0, mode=1: add)
    wvl = jax.random.normal(kw, (B, C, H // 2, W // 2), jnp.float32)

    params = {
        "block_w":  0.1 * jax.random.normal(k1, (3, 3, C, Cout), jnp.float32),
        "block_b":  0.1 * jax.random.normal(k2, (Cout,), jnp.float32),
        "wblock_w": 0.1 * jax.random.normal(k3, (1, 1, C, C), jnp.float32),
        "wblock_b": 0.1 * jax.random.normal(k4, (C,), jnp.float32),
    }

    out = base_encoder_block_forward(
        x, wvl, params=params,
        wavelets_mode=wavelets_mode, pool_mode=pool_mode, pool_block=pool_block)
    out = jax.block_until_ready(out)

    ref = ref_forward(x, wvl, params, wavelets_mode, pool_mode, pool_block)
    assert out.shape == (B, Cout, H // 2, W // 2), out.shape
    err = float(jnp.max(jnp.abs(out - ref)))
    assert jnp.allclose(out, ref, atol=1e-4, rtol=1e-4), err
    print("KERNEL_OK")
</pallas_src>

<mosaic_0001>
module attributes {stable_mosaic.version = 11 : i64} {
  func.func @kernel(%arg0: i32, %arg1: memref<1x4x8x32xf32, #tpu.memory_space<vmem>>, %arg2: memref<1x8x32xf32, #tpu.memory_space<vmem>>, %arg3: memref<120x64xf32, #tpu.memory_space<vmem>>, %arg4: memref<1x64xf32, #tpu.memory_space<vmem>>, %arg5: memref<1x8x64xf32, #tpu.memory_space<vmem>>, %arg6: memref<8x120xf32, #tpu.memory_space<vmem>>) attributes {dimension_semantics = [#tpu.dimension_semantics<parallel>], iteration_bounds = array<i64: 2>, scalar_prefetch = 0 : i64, scratch_operands = 1 : i64, tpu.core_type = #tpu.core_type<tc>, window_params = [{transform_indices = @transform_0, window_bounds = array<i64: 1, 4, 8, 32>}, {transform_indices = @transform_1, window_bounds = array<i64: 1, 8, 32>}, {pipeline_mode = #tpu.pipeline_mode<synchronous>, transform_indices = @transform_2, window_bounds = array<i64: 120, 64>}, {pipeline_mode = #tpu.pipeline_mode<synchronous>, transform_indices = @transform_3, window_bounds = array<i64: 1, 64>}, {transform_indices = @transform_4, window_bounds = array<i64: 1, 8, 64>}]} {
    %c0 = arith.constant 0 : index
    %c0_0 = arith.constant 0 : index
    %c0_1 = arith.constant 0 : index
    %c0_2 = arith.constant 0 : index
    %0 = vector.load %arg1[%c0, %c0_0, %c0_1, %c0_2] : memref<1x4x8x32xf32, #tpu.memory_space<vmem>>, vector<1x1x8x32xf32>
    %1 = vector.shape_cast %0 : vector<1x1x8x32xf32> to vector<8x32xf32>
    %c0_3 = arith.constant 0 : index
    %c1 = arith.constant 1 : index
    %c0_4 = arith.constant 0 : index
    %c0_5 = arith.constant 0 : index
    %2 = vector.load %arg1[%c0_3, %c1, %c0_4, %c0_5] : memref<1x4x8x32xf32, #tpu.memory_space<vmem>>, vector<1x1x8x32xf32>
    %3 = vector.shape_cast %2 : vector<1x1x8x32xf32> to vector<8x32xf32>
    %4 = arith.maximumf %1, %3 : vector<8x32xf32>
    %c0_6 = arith.constant 0 : index
    %c2 = arith.constant 2 : index
    %c0_7 = arith.constant 0 : index
    %c0_8 = arith.constant 0 : index
    %5 = vector.load %arg1[%c0_6, %c2, %c0_7, %c0_8] : memref<1x4x8x32xf32, #tpu.memory_space<vmem>>, vector<1x1x8x32xf32>
    %6 = vector.shape_cast %5 : vector<1x1x8x32xf32> to vector<8x32xf32>
    %c0_9 = arith.constant 0 : index
    %c3 = arith.constant 3 : index
    %c0_10 = arith.constant 0 : index
    %c0_11 = arith.constant 0 : index
    %7 = vector.load %arg1[%c0_9, %c3, %c0_10, %c0_11] : memref<1x4x8x32xf32, #tpu.memory_space<vmem>>, vector<1x1x8x32xf32>
    %8 = vector.shape_cast %7 : vector<1x1x8x32xf32> to vector<8x32xf32>
    %9 = arith.maximumf %6, %8 : vector<8x32xf32>
    %10 = arith.maximumf %4, %9 : vector<8x32xf32>
    %c0_12 = arith.constant 0 : index
    %c0_13 = arith.constant 0 : index
    %c0_14 = arith.constant 0 : index
    %11 = vector.load %arg2[%c0_12, %c0_13, %c0_14] : memref<1x8x32xf32, #tpu.memory_space<vmem>>, vector<1x8x32xf32>
    %12 = vector.shape_cast %11 : vector<1x8x32xf32> to vector<8x32xf32>
    %13 = arith.addf %10, %12 : vector<8x32xf32>
    %cst = arith.constant 0.000000e+00 : f32
    %14 = vector.broadcast %cst : f32 to vector<8x120xf32>
    %c0_15 = arith.constant 0 : index
    %c0_16 = arith.constant 0 : index
    %15 = vector.load %arg6[%c0_15, %c0_16] : memref<8x120xf32, #tpu.memory_space<vmem>>, vector<8x120xf32>
    tpu.vector_store %arg6[%c0_15, %c0_16], %14 {strides = array<i32>} : memref<8x120xf32, #tpu.memory_space<vmem>>, vector<8x120xf32>,
    %16 = vector.extract_strided_slice %13 {offsets = [0, 0], sizes = [7, 32], strides = [1, 1]} : vector<8x32xf32> to vector<7x32xf32>
    %c1_17 = arith.constant 1 : index
    %c4 = arith.constant 4 : index
    %17 = vector.load %arg6[%c1_17, %c4] : memref<8x120xf32, #tpu.memory_space<vmem>>, vector<7x32xf32>
    tpu.vector_store %arg6[%c1_17, %c4], %16 {strides = array<i32>} : memref<8x120xf32, #tpu.memory_space<vmem>>, vector<7x32xf32>,
    %c0_18 = arith.constant 0 : index
    %c44 = arith.constant 44 : index
    %18 = vector.load %arg6[%c0_18, %c44] : memref<8x120xf32, #tpu.memory_space<vmem>>, vector<8x32xf32>
    tpu.vector_store %arg6[%c0_18, %c44], %13 {strides = array<i32>} : memref<8x120xf32, #tpu.memory_space<vmem>>, vector<8x32xf32>,
    %19 = vector.extract_strided_slice %13 {offsets = [1, 0], sizes = [7, 32], strides = [1, 1]} : vector<8x32xf32> to vector<7x32xf32>
    %c0_19 = arith.constant 0 : index
    %c84 = arith.constant 84 : index
    %20 = vector.load %arg6[%c0_19, %c84] : memref<8x120xf32, #tpu.memory_space<vmem>>, vector<7x32xf32>
    tpu.vector_store %arg6[%c0_19, %c84], %19 {strides = array<i32>} : memref<8x120xf32, #tpu.memory_space<vmem>>, vector<7x32xf32>,
    %c0_20 = arith.constant 0 : index
    %c0_21 = arith.constant 0 : index
    %21 = vector.load %arg6[%c0_20, %c0_21] : memref<8x120xf32, #tpu.memory_space<vmem>>, vector<8x120xf32>
    %c0_22 = arith.constant 0 : index
    %c0_23 = arith.constant 0 : index
    %22 = vector.load %arg3[%c0_22, %c0_23] : memref<120x64xf32, #tpu.memory_space<vmem>>, vector<120x64xf32>
    %cst_24 = arith.constant dense<0.000000e+00> : vector<8x64xf32>
    %23 = tpu.matmul %21, %22, %cst_24 {dimension_numbers = #tpu.dot_dimension_numbers<[1], [0], [0], [1], [0, 0, 1, 1], [], []>} : vector<8x120xf32>, vector<120x64xf32>, vector<8x64xf32> -> vector<8x64xf32>
    %c0_25 = arith.constant 0 : index
    %c0_26 = arith.constant 0 : index
    %24 = vector.load %arg4[%c0_25, %c0_26] : memref<1x64xf32, #tpu.memory_space<vmem>>, vector<1x64xf32>
    %25 = vector.broadcast %24 : vector<1x64xf32> to vector<8x64xf32>
    %26 = arith.addf %23, %25 : vector<8x64xf32>
    %cst_27 = arith.constant 0.000000e+00 : f32
    %27 = vector.broadcast %cst_27 : f32 to vector<8x64xf32>
    %28 = arith.maximumf %26, %27 : vector<8x64xf32>
    %c0_28 = arith.constant 0 : index
    %c0_29 = arith.constant 0 : index
    %c0_30 = arith.constant 0 : index
    %29 = vector.load %arg5[%c0_28, %c0_29, %c0_30] : memref<1x8x64xf32, #tpu.memory_space<vmem>>, vector<1x8x64xf32>
    %30 = vector.shape_cast %29 : vector<1x8x64xf32> to vector<8x64xf32>
    %31 = vector.shape_cast %28 : vector<8x64xf32> to vector<1x8x64xf32>
    tpu.vector_store %arg5[%c0_28, %c0_29, %c0_30], %31 {strides = array<i32>} : memref<1x8x64xf32, #tpu.memory_space<vmem>>, vector<1x8x64xf32>,
    return
  }
  func.func @transform_0(%arg0: i32) -> (i32, i32, i32, i32) {
    %c0_i32 = arith.constant 0 : i32
    %c0_i32_0 = arith.constant 0 : i32
    %c0_i32_1 = arith.constant 0 : i32
    %c0_i32_2 = arith.constant 0 : i32
    return %arg0, %c0_i32, %c0_i32_0, %c0_i32_1 : i32, i32, i32, i32
  }
  func.func @transform_1(%arg0: i32) -> (i32, i32, i32) {
    %c0_i32 = arith.constant 0 : i32
    %c0_i32_0 = arith.constant 0 : i32
    %c0_i32_1 = arith.constant 0 : i32
    return %arg0, %c0_i32, %c0_i32_0 : i32, i32, i32
  }
  func.func @transform_2(%arg0: i32) -> (i32, i32) {
    %c0_i32 = arith.constant 0 : i32
    %c0_i32_0 = arith.constant 0 : i32
    %c0_i32_1 = arith.constant 0 : i32
    return %c0_i32, %c0_i32_0 : i32, i32
  }
  func.func @transform_3(%arg0: i32) -> (i32, i32) {
    %c0_i32 = arith.constant 0 : i32
    %c0_i32_0 = arith.constant 0 : i32
    %c0_i32_1 = arith.constant 0 : i32
    return %c0_i32, %c0_i32_0 : i32, i32
  }
  func.func @transform_4(%arg0: i32) -> (i32, i32, i32) {
    %c0_i32 = arith.constant 0 : i32
    %c0_i32_0 = arith.constant 0 : i32
    %c0_i32_1 = arith.constant 0 : i32
    return %arg0, %c0_i32, %c0_i32_0 : i32, i32, i32
  }
}

</mosaic_0001>

<llo_original>
// kernel: tpu_custom_call.1
$region0: #{tpu_custom_call.1}
  #allocation0 [shape = 'u32[]', space=smem, size = 0x4, offset = 0x4, fixed_abs, tag = 'smem constant byte address 0x4 - core index']
  #allocation1 [shape = 'u32[144,128]{1,0:T(1,128)}', space=vmem, size = 0x12000, scoped, tag = 'internal scratch']
  #allocation2 [shape = 'f32[8,120]{1,0:T(8,128)}', space=vmem, size = 0x1000, scoped, tag = 'scratch operand']
  %s0 = inlined_call_operand.vmem [shape: f32[2,4,8,32], index: 0, kind: input, shape index: {}]
  %s1 = inlined_call_operand.vmem [shape: f32[2,8,32], index: 1, kind: input, shape index: {}]
  %s2 = inlined_call_operand.vmem [shape: f32[120,64], index: 2, kind: input, shape index: {}]
  %s3 = inlined_call_operand.vmem [shape: f32[1,64], index: 3, kind: input, shape index: {}]
  %s4 = inlined_call_operand.hbm [shape: f32[2,8,64], index: 4, kind: output, shape index: {}]
  %s5 = sld [smem:[#allocation0]]
  $region49: #{tpu_custom_call.1} parent=0
    _
  %s7 = ssub.s32 1, %s5
  %s8 = scalar_select 0, %s7, %s5
  $region1: #{tpu_custom_call.1} parent=0
    #allocation3 [shape = 'u8[8192]{0}', space=vmem, size = 0x2000, scoped, tag = 'output window, operand 0']
    #allocation4 [shape = 's32[2]{0}', space=sflag, size = 0x8, scoped, tag = 'scoped memory for tpu_custom_call.1']
    %9 = vsyncpa [#allocation4], 0
    %s10 = scalar_lea.sflag [#allocation4], 1
    %11 = vsyncpa %s10, 0
    loop: start=0, step=1, limit=4
    $region2: #{tpu_custom_call.1} parent=1 // loop_pre_header
      _
    $region3: #{tpu_custom_call.1} parent=1 // loop_header
      %s13 = sphi 0, %s17
      %p14 = scmp.ge.s32.totalorder %s13, 4
      %s23 = sphi 0, %s25
      %s26 = sphi 0, %s23
      %s27 = sphi 0, %s26
      %s43 = sphi 0, %s27
      %s49 = sphi 0, %s51
      %s52 = sphi 0, %s49
      %s53 = sphi 0, %s52
      %s69 = sphi 0, %s53
      %s73 = sphi 0, %s73
      %s75 = sphi 0, %s73
      %s76 = sphi 0, %s75
      %s90 = sphi 0, %s76
      %s94 = sphi 0, %s94
      %s96 = sphi 0, %s94
      %s97 = sphi 0, %s96
      %s111 = sphi 0, %s97
      %s117 = sphi 0, %s119
      %s120 = sphi 0, %s117
      %s121 = sphi 0, %s120
      %s137 = sphi 0, %s121
    $region4: #{tpu_custom_call.1} parent=1 // loop_header_branch
      %16 = sbr.rel (%p14) target = $region8
    $region5: #{tpu_custom_call.1} parent=1 // loop_body
      %s18 = ssub.s32 %s13, 1
      %s19 = ssub.s32 %s13, 2
      %s20 = sadd.s32 %s13, 1
      %s21 = ssub.s32 %s13, %s20
      %p22 = scmp.eq.s32.totalorder %s21, 0
      %s24 = sadd.s32 %s23, 1
      %s25 = scalar_select %p22, %s23, %s24
      %p28 = pneg %p22
      %p29 = scmp.eq.s32.totalorder %s13, 1
      %p30 = por %p28, %p29
      %p31 = scmp.ne.s32.totalorder %s23, %s26
      %p32 = scmp.eq.s32.totalorder %s13, 0
      %p33 = por %p31, %p32
      %p34 = scmp.ne.s32.totalorder %s23, %s26
      %p35 = scmp.eq.s32.totalorder %s18, 1
      %p36 = por %p34, %p35
      %p37 = scmp.ne.s32.totalorder %s26, %s27
      %p38 = scmp.eq.s32.totalorder %s18, 0
      %p39 = por %p37, %p38
      %p40 = scmp.ne.s32.totalorder %s26, %s27
      %p41 = scmp.eq.s32.totalorder %s19, 1
      %p42 = por %p40, %p41
      %p44 = scmp.ne.s32.totalorder %s27, %s43
      %p45 = scmp.eq.s32.totalorder %s19, 0
      %p46 = por %p44, %p45
      %s47 = ssub.s32 %s13, %s20
      %p48 = scmp.eq.s32.totalorder %s47, 0
      %s50 = sadd.s32 %s49, 1
      %s51 = scalar_select %p48, %s49, %s50
      %p54 = pneg %p48
      %p55 = scmp.eq.s32.totalorder %s13, 1
      %p56 = por %p54, %p55
      %p57 = scmp.ne.s32.totalorder %s49, %s52
      %p58 = scmp.eq.s32.totalorder %s13, 0
      %p59 = por %p57, %p58
      %p60 = scmp.ne.s32.totalorder %s49, %s52
      %p61 = scmp.eq.s32.totalorder %s18, 1
      %p62 = por %p60, %p61
      %p63 = scmp.ne.s32.totalorder %s52, %s53
      %p64 = scmp.eq.s32.totalorder %s18, 0
      %p65 = por %p63, %p64
      %p66 = scmp.ne.s32.totalorder %s52, %s53
      %p67 = scmp.eq.s32.totalorder %s19, 1
      %p68 = por %p66, %p67
      %p70 = scmp.ne.s32.totalorder %s53, %s69
      %p71 = scmp.eq.s32.totalorder %s19, 0
      %p72 = por %p70, %p71
      %s74 = sadd.s32 %s73, 1
      %p77 = scmp.eq.s32.totalorder %s13, 1
      %p78 = scmp.ne.s32.totalorder %s73, %s75
      %p79 = scmp.eq.s32.totalorder %s13, 0
      %p80 = por %p78, %p79
      %p81 = scmp.ne.s32.totalorder %s73, %s75
      %p82 = scmp.eq.s32.totalorder %s18, 1
      %p83 = por %p81, %p82
      %p84 = scmp.ne.s32.totalorder %s75, %s76
      %p85 = scmp.eq.s32.totalorder %s18, 0
      %p86 = por %p84, %p85
      %p87 = scmp.ne.s32.totalorder %s75, %s76
      %p88 = scmp.eq.s32.totalorder %s19, 1
      %p89 = por %p87, %p88
      %p91 = scmp.ne.s32.totalorder %s76, %s90
      %p92 = scmp.eq.s32.totalorder %s19, 0
      %p93 = por %p91, %p92
      %s95 = sadd.s32 %s94, 1
      %p98 = scmp.eq.s32.totalorder %s13, 1
      %p99 = scmp.ne.s32.totalorder %s94, %s96
      %p100 = scmp.eq.s32.totalorder %s13, 0
      %p101 = por %p99, %p100
      %p102 = scmp.ne.s32.totalorder %s94, %s96
      %p103 = scmp.eq.s32.totalorder %s18, 1
      %p104 = por %p102, %p103
      %p105 = scmp.ne.s32.totalorder %s96, %s97
      %p106 = scmp.eq.s32.totalorder %s18, 0
      %p107 = por %p105, %p106
      %p108 = scmp.ne.s32.totalorder %s96, %s97
      %p109 = scmp.eq.s32.totalorder %s19, 1
      %p110 = por %p108, %p109
      %p112 = scmp.ne.s32.totalorder %s97, %s111
      %p113 = scmp.eq.s32.totalorder %s19, 0
      %p114 = por %p112, %p113
      %s115 = ssub.s32 %s13, %s20
      %p116 = scmp.eq.s32.totalorder %s115, 0
      %s118 = sadd.s32 %s117, 1
      %s119 = scalar_select %p116, %s117, %s118
      %p122 = pneg %p116
      %p123 = scmp.eq.s32.totalorder %s13, 1
      %p124 = por %p122, %p123
      %p125 = scmp.ne.s32.totalorder %s117, %s120
      %p126 = scmp.eq.s32.totalorder %s13, 0
      %p127 = por %p125, %p126
      %p128 = scmp.ne.s32.totalorder %s117, %s120
      %p129 = scmp.eq.s32.totalorder %s18, 1
      %p130 = por %p128, %p129
      %p131 = scmp.ne.s32.totalorder %s120, %s121
      %p132 = scmp.eq.s32.totalorder %s18, 0
      %p133 = por %p131, %p132
      %p134 = scmp.ne.s32.totalorder %s120, %s121
      %p135 = scmp.eq.s32.totalorder %s19, 1
      %p136 = por %p134, %p135
      %p138 = scmp.ne.s32.totalorder %s121, %s137
      %p139 = scmp.eq.s32.totalorder %s19, 0
      %p140 = por %p138, %p139
      %p141 = scmp.le.s32.totalorder 1, %s13
      %p142 = scmp.lt.s32.totalorder %s13, 3
      %p143 = pnand %p141, %p142
      %p144 = pneg %p143
      // Predicated region
      $region9: #{tpu_custom_call.1} parent=5 // pred_check
        _
      $region10: #{tpu_custom_call.1} parent=5 // pred_check_branch
        %146 = sbr.rel (%p143) target = $region12
      $region11: #{tpu_custom_call.1} parent=5 // pred_region
        %s147 = ssub.s32 %s13, 1
        // Predicated region
        $region13: #{tpu_custom_call.1} parent=11 // pred_check
          %p148 = pneg %p86
        $region14: #{tpu_custom_call.1} parent=11 // pred_check_branch
          %150 = sbr.rel (%p148) target = $region16
        $region15: #{tpu_custom_call.1} parent=11 // pred_region
          _
        $region16: #{tpu_custom_call.1} parent=11 // pred_fallthru
          _
        // Predicated region
        $region17: #{tpu_custom_call.1} parent=11 // pred_check
          %p151 = pneg %p107
        $region18: #{tpu_custom_call.1} parent=11 // pred_check_branch
          %153 = sbr.rel (%p151) target = $region20
        $region19: #{tpu_custom_call.1} parent=11 // pred_region
          _
        $region20: #{tpu_custom_call.1} parent=11 // pred_fallthru
          _
      $region12: #{tpu_custom_call.1} parent=5 // pred_fallthru
        _
      %p154 = scmp.lt.s32.totalorder %s13, 2
      // Predicated region
      $region21: #{tpu_custom_call.1} parent=5 // pred_check
        %p155 = pneg %p154
      $region22: #{tpu_custom_call.1} parent=5 // pred_check_branch
        %157 = sbr.rel (%p155) target = $region24
      $region23: #{tpu_custom_call.1} parent=5 // pred_region
        // Predicated region
        $region25: #{tpu_custom_call.1} parent=23 // pred_check
          %p158 = pneg %p33
        $region26: #{tpu_custom_call.1} parent=23 // pred_check_branch
          %160 = sbr.rel (%p158) target = $region28
        $region27: #{tpu_custom_call.1} parent=23 // pred_region
          %p161 = scmp.lt.s32.totalorder %s13, 1
          %s162 = scalar_select %p161, %s13, 1
          %s163 = smul.addr %s162, 4
          %s164 = smul.addr %s163, 8
          %s165 = scalar_lea.vmem %s0, %s164
        $region28: #{tpu_custom_call.1} parent=23 // pred_fallthru
          _
        // Predicated region
        $region29: #{tpu_custom_call.1} parent=23 // pred_check
          %p166 = pneg %p59
        $region30: #{tpu_custom_call.1} parent=23 // pred_check_branch
          %168 = sbr.rel (%p166) target = $region32
        $region31: #{tpu_custom_call.1} parent=23 // pred_region
          %p169 = scmp.lt.s32.totalorder %s13, 1
          %s170 = scalar_select %p169, %s13, 1
          %s171 = smul.addr %s170, 8
          %s172 = scalar_lea.vmem %s1, %s171
        $region32: #{tpu_custom_call.1} parent=23 // pred_fallthru
          _
      $region24: #{tpu_custom_call.1} parent=5 // pred_fallthru
        _
      %p173 = scmp.le.s32.totalorder 1, %s13
      %p174 = scmp.lt.s32.totalorder %s13, 3
      %p175 = pnand %p173, %p174
      %p176 = pneg %p175
      // Predicated region
      $region33: #{tpu_custom_call.1} parent=5 // pred_check
        _
      $region34: #{tpu_custom_call.1} parent=5 // pred_check_branch
        %178 = sbr.rel (%p175) target = $region36
      $region35: #{tpu_custom_call.1} parent=5 // pred_region
        %s179 = ssub.s32 %s13, 1
        %p180 = scmp.lt.s32.totalorder %s18, 1
        %s181 = scalar_select %p180, %s18, 1
        %s182 = smul.addr %s181, 4
        %s183 = smul.addr %s182, 8
        %s184 = scalar_lea.vmem %s0, %s183
        %p185 = pneg %p39
        %p186 = pneg %p36
        %p187 = scmp.lt.s32.totalorder %s18, 1
        %s188 = scalar_select %p187, %s18, 1
        %s189 = smul.addr %s188, 8
        %s190 = scalar_lea.vmem %s1, %s189
        %p191 = pneg %p65
        %p192 = pneg %p62
        %p193 = pneg %p86
        %p194 = pneg %p83
        %p195 = pneg %p107
        %p196 = pneg %p104
        %p197 = pneg %p133
        %p198 = pneg %p130
        %s199 = sand.u32 %s120, 1
        %s200 = scalar_lea.sflag [#allocation4], %s199
        %s201 = sand.u32 %s120, 1
        %s202 = smul.addr %s201, 8
        %s203 = scalar_lea.vmem [#allocation3], %s202
        %p204 = scmp.lt.s32.totalorder %s18, 1
        %s205 = scalar_select %p204, %s18, 1
        %s206 = smul.addr %s205, 4
        %s207 = smul.addr %s206, 8
        %s208 = scalar_lea.vmem %s0, %s207
        %p209 = scmp.lt.s32.totalorder %s18, 1
        %s210 = scalar_select %p209, %s18, 1
        %s211 = smul.addr %s210, 8
        %s212 = scalar_lea.vmem %s1, %s211
        %v213 = vld [vmem:[%s208] sm:$0xff]
        %s214 = scalar_lea.vmem %s208, 8
        %v215 = vld [vmem:[%s214] sm:$0xff]
        %v216 = vmax.f32 %v213, %v215
        %s217 = scalar_lea.vmem %s208, 16
        %v218 = vld [vmem:[%s217] sm:$0xff]
        %s219 = scalar_lea.vmem %s208, 24
        %v220 = vld [vmem:[%s219] sm:$0xff]
        %v221 = vmax.f32 %v218, %v220
        %v222 = vmax.f32 %v216, %v221
        %v223 = vld [vmem:[%s212] sm:$0xff]
        %v224 = vadd.f32 %v222, %v223
        %vm225 = vcmask 982016
        %226 = vst.msk [vmem:[#allocation2] sm:$0xff] %vm225, 0.0
        %228 = vrot.lane.b32.xlu0 %v224, 4
        %v229 = vpop.permute.xlu0 %228
        %vm231 = vcmask 292896
        %232 = vst.msk [vmem:[#allocation2 + $0x1] sm:$0x7f] %vm231, %v229
        %233 = vrot.lane.b32.xlu0 %v224, 44
        %v234 = vpop.permute.xlu0 %233
        %vm236 = vcmask 621920
        %237 = vst.msk [vmem:[#allocation2] sm:$0xff] %vm236, %v234
        %238 = vrot.lane.b32.xlu0 %v224, 84
        %v239 = vpop.permute.xlu0 %238
        %vm241 = vcmask 949921
        %242 = vst.msk [vmem:[#allocation2 - $0x1] sm:$0xfe] %vm241, %v239
        %v243 = vld [vmem:[#allocation2] sm:$0xff]
        %v244 = vld [vmem:[%s2] sm:$0xff]
        %v245 = vld [vmem:[%s2 + $0x8] sm:$0xff]
        %v246 = vld [vmem:[%s2 + $0x10] sm:$0xff]
        %v247 = vld [vmem:[%s2 + $0x18] sm:$0xff]
        %v248 = vld [vmem:[%s2 + $0x20] sm:$0xff]
        %v249 = vld [vmem:[%s2 + $0x28] sm:$0xff]
        %v250 = vld [vmem:[%s2 + $0x30] sm:$0xff]
        %v251 = vld [vmem:[%s2 + $0x38] sm:$0xff]
        %v252 = vld [vmem:[%s2 + $0x40] sm:$0xff]
        %v253 = vld [vmem:[%s2 + $0x48] sm:$0xff]
        %v254 = vld [vmem:[%s2 + $0x50] sm:$0xff]
        %v255 = vld [vmem:[%s2 + $0x58] sm:$0xff]
        %v256 = vld [vmem:[%s2 + $0x60] sm:$0xff]
        %v257 = vld [vmem:[%s2 + $0x68] sm:$0xff]
        %v258 = vld [vmem:[%s2 + $0x70] sm:$0xff]
        %v259 = vld [vmem:[%s3] sm:$0x1]
        %v261 = vlaneseq
        %v262 = vshrl.u32 %v261, 7
        %v263 = vsub.s32 0, %v262
        %v264 = vrot.slane %v259, %v263
        %v267 = vsel %vm225, %v243, 0
        %269 = vmatprep.subr.mxu0 0.0
        %270 = vmatpush1.msra.mxu0 0.0
        %271 = vmatprep.subr.mxu0 0.0
        %272 = vmatpush1.msra.mxu0 %v258
        %273 = vmatprep.subr.mxu0 0.0
        %274 = vmatpush1.msra.mxu0 %v257
        %275 = vmatprep.subr.mxu0 0.0
        %276 = vmatpush1.msra.mxu0 %v256
        %277 = vmatprep.subr.mxu0 0.0
        %278 = vmatpush1.msra.mxu0 %v255
        %279 = vmatprep.subr.mxu0 0.0
        %280 = vmatpush1.msra.mxu0 %v254
        %281 = vmatprep.subr.mxu0 0.0
        %282 = vmatpush1.msra.mxu0 %v253
        %283 = vmatprep.subr.mxu0 0.0
        %284 = vmatpush1.msra.mxu0 %v252
        %285 = vmatprep.subr.mxu0 0.0
        %286 = vmatpush1.msra.mxu0 %v251
        %287 = vmatprep.subr.mxu0 0.0
        %288 = vmatpush1.msra.mxu0 %v250
        %289 = vmatprep.subr.mxu0 0.0
        %290 = vmatpush1.msra.mxu0 %v249
        %291 = vmatprep.subr.mxu0 0.0
        %292 = vmatpush1.msra.mxu0 %v248
        %293 = vmatprep.subr.mxu0 0.0
        %294 = vmatpush1.msra.mxu0 %v247
        %295 = vmatprep.subr.mxu0 0.0
        %296 = vmatpush1.msra.mxu0 %v246
        %297 = vmatprep.subr.mxu0 0.0
        %298 = vmatpush1.msra.mxu0 %v245
        %299 = vmatprep.subr.mxu0 0.0
        %300 = vmatpush1.msra.mxu0 %v244
        %301 = vmatprep.subr.mxu0 0.0
        %302 = vmatpush2.msra.mxu0 0.0
        %303 = vmatprep.subr.mxu0 0.0
        %304 = vmatpush2.msra.mxu0 0.0
        %305 = vmatprep.subr.mxu0 0.0
        %306 = vmatpush2.msra.mxu0 0.0
        %307 = vmatprep.subr.mxu0 0.0
        %308 = vmatpush2.msra.mxu0 0.0
        %309 = vmatprep.subr.mxu0 0.0
        %310 = vmatpush2.msra.mxu0 0.0
        %311 = vmatprep.subr.mxu0 0.0
        %312 = vmatpush2.msra.mxu0 0.0
        %313 = vmatprep.subr.mxu0 0.0
        %314 = vmatpush2.msra.mxu0 0.0
        %315 = vmatprep.subr.mxu0 0.0
        %316 = vmatpush2.msra.mxu0 0.0
        %317 = vmatprep.subr.mxu0 0.0
        %318 = vmatpush2.msra.mxu0 0.0
        %319 = vmatprep.subr.mxu0 0.0
        %320 = vmatpush2.msra.mxu0 0.0
        %321 = vmatprep.subr.mxu0 0.0
        %322 = vmatpush2.msra.mxu0 0.0
        %323 = vmatprep.subr.mxu0 0.0
        %324 = vmatpush2.msra.mxu0 0.0
        %325 = vmatprep.subr.mxu0 0.0
        %326 = vmatpush2.msra.mxu0 0.0
        %327 = vmatprep.subr.mxu0 0.0
        %328 = vmatpush2.msra.mxu0 0.0
        %329 = vmatprep.subr.mxu0 0.0
        %330 = vmatpush2.msra.mxu0 0.0
        %331 = vmatprep.subr.mxu0 0.0
        %332 = vmatpush2.msra.mxu0 0.0
        %333 = vmatprep.mubr.f32.mxu0 0.0
        %334 = vmatmul.mubr.f32.gmra.mxu0 %v267
        %v335 = vpop.f32.mrf.mxu0
        %v336 = vadd.f32 %v264, %v335
        %v337 = vpop.f32.mrf.mxu0
        %338 = vdwg.mxu0
        %v339 = vmax.f32 %v336, 0.0
        %vm340 = vcmask 523264
        %341 = vst.msk [vmem:[%s203] sm:$0xff] %vm340, %v339
        %s342 = sand.u32 %s120, 1
        %s343 = scalar_lea.sflag [#allocation4], %s342
        %s344 = sand.u32 %s120, 1
        %s345 = smul.addr %s344, 8
        %s346 = scalar_lea.vmem [#allocation3], %s345
        // Predicated region
        $region37: #{tpu_custom_call.1} parent=35 // pred_check
          %p347 = pneg %p130
        $region38: #{tpu_custom_call.1} parent=35 // pred_check_branch
          %349 = sbr.rel (%p347) target = $region40
        $region39: #{tpu_custom_call.1} parent=35 // pred_region
          %s351 = ssub.s32 128, 128
          %352 = vsyncadd %s343, %s351
          %s353 = smul.addr %s18, 128
          %s354 = scalar_lea.hbm %s4, %s353
          %s356 = sshll.u32 %s346, 4
          %s357 = int_to_ptr.vmem [resolvable:$true] %s356
          %359 = dma.vmem_to_hbm [thread:$0]  %s357, 128, %s354, %s343
        $region40: #{tpu_custom_call.1} parent=35 // pred_fallthru
          _
      $region36: #{tpu_custom_call.1} parent=5 // pred_fallthru
        _
      %p360 = scmp.le.s32.totalorder 2, %s13
      // Predicated region
      $region41: #{tpu_custom_call.1} parent=5 // pred_check
        %p361 = pneg %p360
      $region42: #{tpu_custom_call.1} parent=5 // pred_check_branch
        %363 = sbr.rel (%p361) target = $region44
      $region43: #{tpu_custom_call.1} parent=5 // pred_region
        %s364 = ssub.s32 %s13, 2
        // Predicated region
        $region45: #{tpu_custom_call.1} parent=43 // pred_check
          %p365 = pneg %p136
        $region46: #{tpu_custom_call.1} parent=43 // pred_check_branch
          %367 = sbr.rel (%p365) target = $region48
        $region47: #{tpu_custom_call.1} parent=43 // pred_region
          %s368 = sand.u32 %s121, 1
          %s369 = scalar_lea.sflag [#allocation4], %s368
          %s370 = sand.u32 %s121, 1
          %s371 = smul.addr %s370, 8
          %s372 = scalar_lea.vmem [#allocation3], %s371
          %373 = dma.done %s369, 128
        $region48: #{tpu_custom_call.1} parent=43 // pred_fallthru
          _
      $region44: #{tpu_custom_call.1} parent=5 // pred_fallthru
        _
    $region6: #{tpu_custom_call.1} parent=1 // loop_footer
      %s17 = sadd.s32 1, %s13
    $region7: #{tpu_custom_call.1} parent=1 // loop_footer_branch
      %12 = sbr.rel target = $region3
    $region8: #{tpu_custom_call.1} parent=1 // loop_exit
      _
    %374 = vsyncpa [#allocation4], 1
    %s375 = scalar_lea.sflag [#allocation4], 1
    %376 = vsyncpa %s375, 1

</llo_original>
